<compile_context>
chip_gen: v6e
topology: v6e:2x2x1
jax: 0.10.0
libtpu: 0.0.40
codegen_flags: <defaults>
</compile_context>

<pallas_src>
import functools

import numpy as np
import jax
import jax.numpy as jnp
from jax.experimental import pallas as pl
from jax.experimental.pallas import tpu as pltpu


# --------------------------------- kernel -----------------------------------
def _reorg_kernel(x_ref, sel_ref, o_ref, *, stride, W, W2):
    # x_ref:   (1, Cblk*H2, s*W)   rows = s concatenated source rows per output row
    # sel_ref: (W, s*W2)           0/1 selection matrix (column dx*W2+w2 picks lane s*w2+dx)
    # o_ref:   (1, s*s, Cblk*H2, W2)
    s = stride
    rows = x_ref[0]                                   # (Cblk*H2, s*W)
    sel = sel_ref[...]                                # (W, s*W2), f32
    for dy in range(s):                               # static unroll (s is tiny)
        sub = rows[:, dy * W:(dy + 1) * W].astype(jnp.float32)   # contiguous lane slice
        picked = jnp.dot(sub, sel,
                         preferred_element_type=jnp.float32,
                         precision=jax.lax.Precision.HIGHEST)    # exact 0/1 selection
        for dx in range(s):
            k = dy * s + dx
            o_ref[0, k] = picked[:, dx * W2:(dx + 1) * W2].astype(o_ref.dtype)


# -------------------------------- wrapper ------------------------------------
def _pick_cblk(B, C, H2, row_elems, esize, budget_bytes=1 << 20):
    """Largest channel block whose input tile fits the budget, with (8,·)-friendly
    sublane counts, shrunk if needed so the grid has >=4 programs (pipelining / 2 TCs)."""
    legal = [d for d in range(1, C + 1)
             if C % d == 0 and (d == C or (d * H2) % 8 == 0)]
    fit = [d for d in legal if d * H2 * row_elems * esize <= budget_bytes] or [min(legal)]
    cblk = max(fit)
    while B * (C // cblk) < 4:
        smaller = [d for d in fit if d < cblk]
        if not smaller:
            break
        cblk = max(smaller)
    return cblk


@functools.partial(jax.jit, static_argnames=("stride",))
def reorg_layer_forward(x, stride=2):
    B, C, H, W = x.shape
    s = int(stride)
    assert H % s == 0 and W % s == 0, "stride must divide H and W"
    H2, W2 = H // s, W // s

    # Free contiguous reshape: row (c*H2 + h2) = [x[b,c,s*h2+0,:], ..., x[b,c,s*h2+s-1,:]]
    x_rows = x.reshape(B, C * H2, s * W)

    # Constant 0/1 selection matrix: column dx*W2 + w2 picks source lane s*w2 + dx.
    w_idx = np.arange(W)[:, None]
    col = np.arange(s * W2)[None, :]
    sel = (w_idx == (s * (col % W2) + col // W2)).astype(np.float32)   # (W, s*W2)

    esize = jnp.dtype(x.dtype).itemsize
    cblk = _pick_cblk(B, C, H2, s * W, esize)
    n_cblk = C // cblk

    kernel = functools.partial(_reorg_kernel, stride=s, W=W, W2=W2)
    out = pl.pallas_call(
        kernel,
        out_shape=jax.ShapeDtypeStruct((B, s * s, C * H2, W2), x.dtype),
        grid_spec=pltpu.PrefetchScalarGridSpec(
            num_scalar_prefetch=0,
            grid=(B, n_cblk),
            in_specs=[
                pl.BlockSpec((1, cblk * H2, s * W), lambda b, cb: (b, cb, 0)),
                pl.BlockSpec((W, s * W2), lambda b, cb: (0, 0)),   # stays VMEM-resident
            ],
            out_specs=pl.BlockSpec((1, s * s, cblk * H2, W2),
                                   lambda b, cb: (b, 0, cb, 0)),
        ),
        compiler_params=pltpu.CompilerParams(
            dimension_semantics=("parallel", "parallel")),
    )(x_rows, jnp.asarray(sel))

    # Free contiguous reshape: (s*s, C*H2) -> (s*s*C, H2); channel index = k*C + c.
    return out.reshape(B, s * s * C, H2, W2)


# ------------------------------- reference -----------------------------------
def _reference_reorg(x, stride=2):
    """Pure-JAX transcription of the PyTorch ReOrgLayer.forward (views/transposes)."""
    B, C, H, W = x.shape
    hs = ws = stride
    y = x.reshape(B, C, H // hs, hs, W // ws, ws)
    y = jnp.swapaxes(y, 3, 4)
    y = y.reshape(B, C, (H // hs) * (W // ws), hs * ws)
    y = jnp.swapaxes(y, 2, 3)
    y = y.reshape(B, C, hs * ws, H // hs, W // ws)
    y = jnp.swapaxes(y, 1, 2)
    return y.reshape(B, C * hs * ws, H // hs, W // ws)


if __name__ == "__main__":
    key = jax.random.PRNGKey(0)
    B, C, H, W = 2, 4, 16, 16
    x = jax.random.normal(key, (B, C, H, W), jnp.float32)

    out = reorg_layer_forward(x, stride=2)
    out = jax.block_until_ready(out)

    ref = _reference_reorg(x, stride=2)
    assert out.shape == (B, 4 * C, H // 2, W // 2), out.shape
    max_err = float(jnp.max(jnp.abs(out - ref)))
    assert jnp.allclose(out, ref, atol=1e-6, rtol=1e-6), max_err

    print("KERNEL_OK")
</pallas_src>

<mosaic_0001>
module attributes {stable_mosaic.version = 11 : i64} {
  func.func @_reorg_kernel(%arg0: i32, %arg1: i32, %arg2: memref<1x16x32xf32, #tpu.memory_space<vmem>>, %arg3: memref<16x16xf32, #tpu.memory_space<vmem>>, %arg4: memref<1x4x16x8xf32, #tpu.memory_space<vmem>>) attributes {dimension_semantics = [#tpu.dimension_semantics<parallel>, #tpu.dimension_semantics<parallel>], iteration_bounds = array<i64: 2, 2>, scalar_prefetch = 0 : i64, scratch_operands = 0 : i64, tpu.core_type = #tpu.core_type<tc>, window_params = [{transform_indices = @transform_0, window_bounds = array<i64: 1, 16, 32>}, {pipeline_mode = #tpu.pipeline_mode<synchronous>, transform_indices = @transform_1, window_bounds = array<i64: 16, 16>}, {transform_indices = @transform_2, window_bounds = array<i64: 1, 4, 16, 8>}]} {
    %c0 = arith.constant 0 : index
    %c0_0 = arith.constant 0 : index
    %c0_1 = arith.constant 0 : index
    %0 = vector.load %arg2[%c0, %c0_0, %c0_1] : memref<1x16x32xf32, #tpu.memory_space<vmem>>, vector<1x16x32xf32>
    %1 = vector.shape_cast %0 : vector<1x16x32xf32> to vector<16x32xf32>
    %c0_2 = arith.constant 0 : index
    %c0_3 = arith.constant 0 : index
    %2 = vector.load %arg3[%c0_2, %c0_3] : memref<16x16xf32, #tpu.memory_space<vmem>>, vector<16x16xf32>
    %3 = vector.extract_strided_slice %1 {offsets = [0, 0], sizes = [16, 16], strides = [1, 1]} : vector<16x32xf32> to vector<16x16xf32>
    %cst = arith.constant dense<0.000000e+00> : vector<16x16xf32>
    %4 = tpu.matmul %3, %2, %cst {dimension_numbers = #tpu.dot_dimension_numbers<[1], [0], [0], [1], [0, 0, 1, 1], [], []>, precision = #tpu.contract_precision<fp32>} : vector<16x16xf32>, vector<16x16xf32>, vector<16x16xf32> -> vector<16x16xf32>
    %5 = vector.extract_strided_slice %4 {offsets = [0, 0], sizes = [16, 8], strides = [1, 1]} : vector<16x16xf32> to vector<16x8xf32>
    %c0_4 = arith.constant 0 : index
    %c0_5 = arith.constant 0 : index
    %c0_6 = arith.constant 0 : index
    %c0_7 = arith.constant 0 : index
    %6 = vector.load %arg4[%c0_4, %c0_5, %c0_6, %c0_7] : memref<1x4x16x8xf32, #tpu.memory_space<vmem>>, vector<1x1x16x8xf32>
    %7 = vector.shape_cast %6 : vector<1x1x16x8xf32> to vector<16x8xf32>
    %8 = vector.shape_cast %5 : vector<16x8xf32> to vector<1x1x16x8xf32>
    tpu.vector_store %arg4[%c0_4, %c0_5, %c0_6, %c0_7], %8 {strides = array<i32>} : memref<1x4x16x8xf32, #tpu.memory_space<vmem>>, vector<1x1x16x8xf32>,
    %9 = vector.extract_strided_slice %4 {offsets = [0, 8], sizes = [16, 8], strides = [1, 1]} : vector<16x16xf32> to vector<16x8xf32>
    %c0_8 = arith.constant 0 : index
    %c1 = arith.constant 1 : index
    %c0_9 = arith.constant 0 : index
    %c0_10 = arith.constant 0 : index
    %10 = vector.load %arg4[%c0_8, %c1, %c0_9, %c0_10] : memref<1x4x16x8xf32, #tpu.memory_space<vmem>>, vector<1x1x16x8xf32>
    %11 = vector.shape_cast %10 : vector<1x1x16x8xf32> to vector<16x8xf32>
    %12 = vector.shape_cast %9 : vector<16x8xf32> to vector<1x1x16x8xf32>
    tpu.vector_store %arg4[%c0_8, %c1, %c0_9, %c0_10], %12 {strides = array<i32>} : memref<1x4x16x8xf32, #tpu.memory_space<vmem>>, vector<1x1x16x8xf32>,
    %13 = vector.extract_strided_slice %1 {offsets = [0, 16], sizes = [16, 16], strides = [1, 1]} : vector<16x32xf32> to vector<16x16xf32>
    %cst_11 = arith.constant dense<0.000000e+00> : vector<16x16xf32>
    %14 = tpu.matmul %13, %2, %cst_11 {dimension_numbers = #tpu.dot_dimension_numbers<[1], [0], [0], [1], [0, 0, 1, 1], [], []>, precision = #tpu.contract_precision<fp32>} : vector<16x16xf32>, vector<16x16xf32>, vector<16x16xf32> -> vector<16x16xf32>
    %15 = vector.extract_strided_slice %14 {offsets = [0, 0], sizes = [16, 8], strides = [1, 1]} : vector<16x16xf32> to vector<16x8xf32>
    %c0_12 = arith.constant 0 : index
    %c2 = arith.constant 2 : index
    %c0_13 = arith.constant 0 : index
    %c0_14 = arith.constant 0 : index
    %16 = vector.load %arg4[%c0_12, %c2, %c0_13, %c0_14] : memref<1x4x16x8xf32, #tpu.memory_space<vmem>>, vector<1x1x16x8xf32>
    %17 = vector.shape_cast %16 : vector<1x1x16x8xf32> to vector<16x8xf32>
    %18 = vector.shape_cast %15 : vector<16x8xf32> to vector<1x1x16x8xf32>
    tpu.vector_store %arg4[%c0_12, %c2, %c0_13, %c0_14], %18 {strides = array<i32>} : memref<1x4x16x8xf32, #tpu.memory_space<vmem>>, vector<1x1x16x8xf32>,
    %19 = vector.extract_strided_slice %14 {offsets = [0, 8], sizes = [16, 8], strides = [1, 1]} : vector<16x16xf32> to vector<16x8xf32>
    %c0_15 = arith.constant 0 : index
    %c3 = arith.constant 3 : index
    %c0_16 = arith.constant 0 : index
    %c0_17 = arith.constant 0 : index
    %20 = vector.load %arg4[%c0_15, %c3, %c0_16, %c0_17] : memref<1x4x16x8xf32, #tpu.memory_space<vmem>>, vector<1x1x16x8xf32>
    %21 = vector.shape_cast %20 : vector<1x1x16x8xf32> to vector<16x8xf32>
    %22 = vector.shape_cast %19 : vector<16x8xf32> to vector<1x1x16x8xf32>
    tpu.vector_store %arg4[%c0_15, %c3, %c0_16, %c0_17], %22 {strides = array<i32>} : memref<1x4x16x8xf32, #tpu.memory_space<vmem>>, vector<1x1x16x8xf32>,
    return
  }
  func.func @transform_0(%arg0: i32, %arg1: i32) -> (i32, i32, i32) {
    %c0_i32 = arith.constant 0 : i32
    %c0_i32_0 = arith.constant 0 : i32
    return %arg0, %arg1, %c0_i32 : i32, i32, i32
  }
  func.func @transform_1(%arg0: i32, %arg1: i32) -> (i32, i32) {
    %c0_i32 = arith.constant 0 : i32
    %c0_i32_0 = arith.constant 0 : i32
    %c0_i32_1 = arith.constant 0 : i32
    return %c0_i32, %c0_i32_0 : i32, i32
  }
  func.func @transform_2(%arg0: i32, %arg1: i32) -> (i32, i32, i32, i32) {
    %c0_i32 = arith.constant 0 : i32
    %c0_i32_0 = arith.constant 0 : i32
    %c0_i32_1 = arith.constant 0 : i32
    return %arg0, %c0_i32, %arg1, %c0_i32_0 : i32, i32, i32, i32
  }
}

</mosaic_0001>

<llo_original>
// kernel: reorg_layer_forward.1
$region0: #{reorg_layer_forward.1}
  #allocation0 [shape = 'u32[]', space=smem, size = 0x4, offset = 0x4, fixed_abs, tag = 'smem constant byte address 0x4 - core index']
  #allocation1 [shape = 'u32[144,128]{1,0:T(1,128)}', space=vmem, size = 0x12000, scoped, tag = 'internal scratch']
  %s0 = inlined_call_operand.vmem [shape: f32[2,32,32], index: 0, kind: input, shape index: {}]
  %s1 = inlined_call_operand.vmem [shape: f32[16,16], index: 1, kind: input, shape index: {}]
  %s2 = inlined_call_operand.vmem [shape: f32[2,4,32,8], index: 2, kind: output, shape index: {}]
  %s3 = sld [smem:[#allocation0]]
  $region75: #{reorg_layer_forward.1} parent=0
    _
  %s5 = ssub.s32 1, %s3
  %s6 = scalar_select 0, %s5, %s3
  $region1: #{reorg_layer_forward.1} parent=0
    #allocation2 [shape = 'u8[65536]{0}', space=vmem, size = 0x10000, scoped, tag = 'output window, operand 0']
    loop: start=0, step=1, limit=6
    $region2: #{reorg_layer_forward.1} parent=1 // loop_pre_header
      _
    $region3: #{reorg_layer_forward.1} parent=1 // loop_header
      %s8 = sphi 0, %s12
      %p9 = scmp.ge.s32.totalorder %s8, 6
      %s15 = sphi 0, %s27
      %s16 = sphi 0, %s23
      %s17 = sphi 0, %s15
      %s18 = sphi 0, %s16
      %s19 = sphi 0, %s17
      %s20 = sphi 0, %s18
      %s32 = sphi 0, %s34
      %s35 = sphi 0, %s32
      %s36 = sphi 0, %s35
      %s52 = sphi 0, %s36
      %s56 = sphi 0, %s56
      %s58 = sphi 0, %s56
      %s59 = sphi 0, %s58
      %s73 = sphi 0, %s59
      %s81 = sphi 0, %s83
      %s84 = sphi 0, %s81
      %s85 = sphi 0, %s84
      %s101 = sphi 0, %s85
    $region4: #{reorg_layer_forward.1} parent=1 // loop_header_branch
      %11 = sbr.rel (%p9) target = $region8
    $region5: #{reorg_layer_forward.1} parent=1 // loop_body
      %s13 = ssub.s32 %s8, 1
      %s14 = ssub.s32 %s8, 2
      %s21 = sadd.s32 1, %s16
      %p22 = scmp.ge.s32.totalorder %s21, 2
      %s23 = scalar_select %p22, 0, %s21
      %s24 = sadd.s32 1, %s15
      %s25 = scalar_select %p22, %s24, %s15
      %p26 = scmp.ge.s32.totalorder %s25, 2
      %s27 = scalar_select %p26, 0, %s25
      %s28 = ssub.s32 %s15, %s27
      %s29 = ssub.s32 %s16, %s23
      %s30 = sor.u32 %s28, %s29
      %p31 = scmp.eq.s32.totalorder %s30, 0
      %s33 = sadd.s32 %s32, 1
      %s34 = scalar_select %p31, %s32, %s33
      %p37 = pneg %p31
      %p38 = scmp.eq.s32.totalorder %s8, 3
      %p39 = por %p37, %p38
      %p40 = scmp.ne.s32.totalorder %s32, %s35
      %p41 = scmp.eq.s32.totalorder %s8, 0
      %p42 = por %p40, %p41
      %p43 = scmp.ne.s32.totalorder %s32, %s35
      %p44 = scmp.eq.s32.totalorder %s13, 3
      %p45 = por %p43, %p44
      %p46 = scmp.ne.s32.totalorder %s35, %s36
      %p47 = scmp.eq.s32.totalorder %s13, 0
      %p48 = por %p46, %p47
      %p49 = scmp.ne.s32.totalorder %s35, %s36
      %p50 = scmp.eq.s32.totalorder %s14, 3
      %p51 = por %p49, %p50
      %p53 = scmp.ne.s32.totalorder %s36, %s52
      %p54 = scmp.eq.s32.totalorder %s14, 0
      %p55 = por %p53, %p54
      %s57 = sadd.s32 %s56, 1
      %p60 = scmp.eq.s32.totalorder %s8, 3
      %p61 = scmp.ne.s32.totalorder %s56, %s58
      %p62 = scmp.eq.s32.totalorder %s8, 0
      %p63 = por %p61, %p62
      %p64 = scmp.ne.s32.totalorder %s56, %s58
      %p65 = scmp.eq.s32.totalorder %s13, 3
      %p66 = por %p64, %p65
      %p67 = scmp.ne.s32.totalorder %s58, %s59
      %p68 = scmp.eq.s32.totalorder %s13, 0
      %p69 = por %p67, %p68
      %p70 = scmp.ne.s32.totalorder %s58, %s59
      %p71 = scmp.eq.s32.totalorder %s14, 3
      %p72 = por %p70, %p71
      %p74 = scmp.ne.s32.totalorder %s59, %s73
      %p75 = scmp.eq.s32.totalorder %s14, 0
      %p76 = por %p74, %p75
      %s77 = ssub.s32 %s15, %s27
      %s78 = ssub.s32 %s16, %s23
      %s79 = sor.u32 %s77, %s78
      %p80 = scmp.eq.s32.totalorder %s79, 0
      %s82 = sadd.s32 %s81, 1
      %s83 = scalar_select %p80, %s81, %s82
      %p86 = pneg %p80
      %p87 = scmp.eq.s32.totalorder %s8, 3
      %p88 = por %p86, %p87
      %p89 = scmp.ne.s32.totalorder %s81, %s84
      %p90 = scmp.eq.s32.totalorder %s8, 0
      %p91 = por %p89, %p90
      %p92 = scmp.ne.s32.totalorder %s81, %s84
      %p93 = scmp.eq.s32.totalorder %s13, 3
      %p94 = por %p92, %p93
      %p95 = scmp.ne.s32.totalorder %s84, %s85
      %p96 = scmp.eq.s32.totalorder %s13, 0
      %p97 = por %p95, %p96
      %p98 = scmp.ne.s32.totalorder %s84, %s85
      %p99 = scmp.eq.s32.totalorder %s14, 3
      %p100 = por %p98, %p99
      %p102 = scmp.ne.s32.totalorder %s85, %s101
      %p103 = scmp.eq.s32.totalorder %s14, 0
      %p104 = por %p102, %p103
      %p105 = scmp.le.s32.totalorder 1, %s8
      %p106 = scmp.lt.s32.totalorder %s8, 5
      %p107 = pnand %p105, %p106
      %p108 = pneg %p107
      // Predicated region
      $region9: #{reorg_layer_forward.1} parent=5 // pred_check
        _
      $region10: #{reorg_layer_forward.1} parent=5 // pred_check_branch
        %110 = sbr.rel (%p107) target = $region12
      $region11: #{reorg_layer_forward.1} parent=5 // pred_region
        %s111 = ssub.s32 %s8, 1
        // Predicated region
        $region13: #{reorg_layer_forward.1} parent=11 // pred_check
          %p112 = pneg %p69
        $region14: #{reorg_layer_forward.1} parent=11 // pred_check_branch
          %114 = sbr.rel (%p112) target = $region16
        $region15: #{reorg_layer_forward.1} parent=11 // pred_region
          _
        $region16: #{reorg_layer_forward.1} parent=11 // pred_fallthru
          _
      $region12: #{reorg_layer_forward.1} parent=5 // pred_fallthru
        _
      %p115 = scmp.lt.s32.totalorder %s8, 4
      // Predicated region
      $region17: #{reorg_layer_forward.1} parent=5 // pred_check
        %p116 = pneg %p115
      $region18: #{reorg_layer_forward.1} parent=5 // pred_check_branch
        %118 = sbr.rel (%p116) target = $region20
      $region19: #{reorg_layer_forward.1} parent=5 // pred_region
        // Predicated region
        $region21: #{reorg_layer_forward.1} parent=19 // pred_check
          %p119 = pneg %p42
        $region22: #{reorg_layer_forward.1} parent=19 // pred_check_branch
          %121 = sbr.rel (%p119) target = $region24
        $region23: #{reorg_layer_forward.1} parent=19 // pred_region
          %s122 = smul.u32 2, %s16
          %p123 = scmp.lt.s32.totalorder %s15, 1
          %s124 = scalar_select %p123, %s15, 1
          %p125 = scmp.lt.s32.totalorder %s122, 3
          %s126 = scalar_select %p125, %s122, 3
          %s127 = smul.addr %s124, 4
          %s128 = sadd.s32 %s126, %s127
          %s129 = smul.addr %s128, 8
          %s130 = scalar_lea.vmem %s0, %s129
          %s131 = smul.u32 2, %s16
        $region24: #{reorg_layer_forward.1} parent=19 // pred_fallthru
          _
      $region20: #{reorg_layer_forward.1} parent=5 // pred_fallthru
        _
      %p132 = scmp.le.s32.totalorder 1, %s8
      %p133 = scmp.lt.s32.totalorder %s8, 5
      %p134 = pnand %p132, %p133
      %p135 = pneg %p134
      // Predicated region
      $region25: #{reorg_layer_forward.1} parent=5 // pred_check
        _
      $region26: #{reorg_layer_forward.1} parent=5 // pred_check_branch
        %137 = sbr.rel (%p134) target = $region28
      $region27: #{reorg_layer_forward.1} parent=5 // pred_region
        %s138 = ssub.s32 %s8, 1
        %s139 = smul.u32 2, %s18
        %p140 = scmp.lt.s32.totalorder %s17, 1
        %s141 = scalar_select %p140, %s17, 1
        %p142 = scmp.lt.s32.totalorder %s139, 3
        %s143 = scalar_select %p142, %s139, 3
        %s144 = smul.addr %s141, 4
        %s145 = sadd.s32 %s143, %s144
        %s146 = smul.addr %s145, 8
        %s147 = scalar_lea.vmem %s0, %s146
        %p148 = pneg %p48
        %p149 = pneg %p45
        %p150 = pneg %p69
        %p151 = pneg %p66
        %p152 = pneg %p97
        %p153 = pneg %p94
        %s154 = sand.u32 %s84, 1
        %s155 = sand.u32 %s84, 1
        %s156 = smul.addr %s155, 64
        %s157 = scalar_lea.vmem [#allocation2], %s156
        %s158 = smul.u32 2, %s18
        %p159 = scmp.lt.s32.totalorder %s17, 1
        %s160 = scalar_select %p159, %s17, 1
        %p161 = scmp.lt.s32.totalorder %s158, 3
        %s162 = scalar_select %p161, %s158, 3
        %s163 = smul.addr %s160, 4
        %s164 = sadd.s32 %s162, %s163
        %s165 = smul.addr %s164, 8
        %s166 = scalar_lea.vmem %s0, %s165
        %s167 = smul.u32 2, %s18
        %s168 = smul.u32 2, %s18
        %v169 = vld [vmem:[%s166] sm:$0xff]
        %v170 = vld [vmem:[%s166 + $0x8] sm:$0xff]
        %v171 = vld [vmem:[%s1] sm:$0xff]
        %v172 = vld [vmem:[%s1 + $0x8] sm:$0xff]
        %vm173 = vcmask 130048
        %v175 = vsel %vm173, %v169, 0
        %v178 = vsel %vm173, %v170, 0
        %180 = vmatprep.subr.mxu0 0.0
        %181 = vmatpush1.msra.mxu0 0.0
        %182 = vmatprep.subr.mxu0 0.0
        %183 = vmatpush1.msra.mxu0 0.0
        %184 = vmatprep.subr.mxu0 0.0
        %185 = vmatpush1.msra.mxu0 0.0
        %186 = vmatprep.subr.mxu0 0.0
        %187 = vmatpush1.msra.mxu0 0.0
        %188 = vmatprep.subr.mxu0 0.0
        %189 = vmatpush1.msra.mxu0 0.0
        %190 = vmatprep.subr.mxu0 0.0
        %191 = vmatpush1.msra.mxu0 0.0
        %192 = vmatprep.subr.mxu0 0.0
        %193 = vmatpush1.msra.mxu0 0.0
        %194 = vmatprep.subr.mxu0 0.0
        %195 = vmatpush1.msra.mxu0 0.0
        %196 = vmatprep.subr.mxu0 0.0
        %197 = vmatpush1.msra.mxu0 0.0
        %198 = vmatprep.subr.mxu0 0.0
        %199 = vmatpush1.msra.mxu0 0.0
        %200 = vmatprep.subr.mxu0 0.0
        %201 = vmatpush1.msra.mxu0 0.0
        %202 = vmatprep.subr.mxu0 0.0
        %203 = vmatpush1.msra.mxu0 0.0
        %204 = vmatprep.subr.mxu0 0.0
        %205 = vmatpush1.msra.mxu0 0.0
        %206 = vmatprep.subr.mxu0 0.0
        %207 = vmatpush1.msra.mxu0 0.0
        %208 = vmatprep.subr.mxu0 0.0
        %v209 = vand.u32 %v172, 4294901760
        %210 = vmatpush1.msra.mxu0 %v209
        %211 = vmatprep.subr.mxu0 0.0
        %v212 = vand.u32 %v171, 4294901760
        %213 = vmatpush1.msra.mxu0 %v212
        %214 = vmatprep.subr.mxu0 0.0
        %215 = vmatpush2.msra.mxu0 0.0
        %216 = vmatprep.subr.mxu0 0.0
        %217 = vmatpush2.msra.mxu0 0.0
        %218 = vmatprep.subr.mxu0 0.0
        %219 = vmatpush2.msra.mxu0 0.0
        %220 = vmatprep.subr.mxu0 0.0
        %221 = vmatpush2.msra.mxu0 0.0
        %222 = vmatprep.subr.mxu0 0.0
        %223 = vmatpush2.msra.mxu0 0.0
        %224 = vmatprep.subr.mxu0 0.0
        %225 = vmatpush2.msra.mxu0 0.0
        %226 = vmatprep.subr.mxu0 0.0
        %227 = vmatpush2.msra.mxu0 0.0
        %228 = vmatprep.subr.mxu0 0.0
        %229 = vmatpush2.msra.mxu0 0.0
        %230 = vmatprep.subr.mxu0 0.0
        %231 = vmatpush2.msra.mxu0 0.0
        %232 = vmatprep.subr.mxu0 0.0
        %233 = vmatpush2.msra.mxu0 0.0
        %234 = vmatprep.subr.mxu0 0.0
        %235 = vmatpush2.msra.mxu0 0.0
        %236 = vmatprep.subr.mxu0 0.0
        %237 = vmatpush2.msra.mxu0 0.0
        %238 = vmatprep.subr.mxu0 0.0
        %239 = vmatpush2.msra.mxu0 0.0
        %240 = vmatprep.subr.mxu0 0.0
        %241 = vmatpush2.msra.mxu0 0.0
        %242 = vmatprep.subr.mxu0 0.0
        %243 = vmatpush2.msra.mxu0 0.0
        %244 = vmatprep.subr.mxu0 0.0
        %245 = vmatpush2.msra.mxu0 0.0
        %246 = vmatprep.mubr.f32.mxu0 0.0
        %v247 = vand.u32 %v175, 4294901760
        %v248 = vsub.f32 %v175, %v247
        %v249 = vand.u32 %v248, 4294901760
        %v250 = vsub.f32 %v248, %v249
        %v251 = vand.u32 %v250, 4294901760
        %252 = vmatmul.mubr.f32.gmra.mxu0 %v251
        %v253 = vpop.f32.mrf.mxu0
        %v254 = vadd.f32 0.0, %v253
        %v255 = vpop.f32.mrf.mxu0
        %256 = vmatprep.mubr.f32.mxu0 0.0
        %v257 = vand.u32 %v178, 4294901760
        %v258 = vsub.f32 %v178, %v257
        %v259 = vand.u32 %v258, 4294901760
        %v260 = vsub.f32 %v258, %v259
        %v261 = vand.u32 %v260, 4294901760
        %262 = vmatmul.mubr.f32.gmra.mxu0 %v261
        %v263 = vpop.f32.mrf.mxu0
        %v264 = vadd.f32 0.0, %v263
        %v265 = vpop.f32.mrf.mxu0
        %266 = vdwg.mxu0
        %267 = vmatprep.subr.mxu0 0.0
        %268 = vmatpush1.msra.mxu0 0.0
        %269 = vmatprep.subr.mxu0 0.0
        %270 = vmatpush1.msra.mxu0 0.0
        %271 = vmatprep.subr.mxu0 0.0
        %272 = vmatpush1.msra.mxu0 0.0
        %273 = vmatprep.subr.mxu0 0.0
        %274 = vmatpush1.msra.mxu0 0.0
        %275 = vmatprep.subr.mxu0 0.0
        %276 = vmatpush1.msra.mxu0 0.0
        %277 = vmatprep.subr.mxu0 0.0
        %278 = vmatpush1.msra.mxu0 0.0
        %279 = vmatprep.subr.mxu0 0.0
        %280 = vmatpush1.msra.mxu0 0.0
        %281 = vmatprep.subr.mxu0 0.0
        %282 = vmatpush1.msra.mxu0 0.0
        %283 = vmatprep.subr.mxu0 0.0
        %284 = vmatpush1.msra.mxu0 0.0
        %285 = vmatprep.subr.mxu0 0.0
        %286 = vmatpush1.msra.mxu0 0.0
        %287 = vmatprep.subr.mxu0 0.0
        %288 = vmatpush1.msra.mxu0 0.0
        %289 = vmatprep.subr.mxu0 0.0
        %290 = vmatpush1.msra.mxu0 0.0
        %291 = vmatprep.subr.mxu0 0.0
        %292 = vmatpush1.msra.mxu0 0.0
        %293 = vmatprep.subr.mxu0 0.0
        %294 = vmatpush1.msra.mxu0 0.0
        %295 = vmatprep.subr.mxu0 0.0
        %v296 = vand.u32 %v172, 4294901760
        %v297 = vsub.f32 %v172, %v296
        %v298 = vand.u32 %v297, 4294901760
        %v299 = vsub.f32 %v297, %v298
        %v300 = vand.u32 %v299, 4294901760
        %301 = vmatpush1.msra.mxu0 %v300
        %302 = vmatprep.subr.mxu0 0.0
        %v303 = vand.u32 %v171, 4294901760
        %v304 = vsub.f32 %v171, %v303
        %v305 = vand.u32 %v304, 4294901760
        %v306 = vsub.f32 %v304, %v305
        %v307 = vand.u32 %v306, 4294901760
        %308 = vmatpush1.msra.mxu0 %v307
        %309 = vmatprep.subr.mxu0 0.0
        %310 = vmatpush2.msra.mxu0 0.0
        %311 = vmatprep.subr.mxu0 0.0
        %312 = vmatpush2.msra.mxu0 0.0
        %313 = vmatprep.subr.mxu0 0.0
        %314 = vmatpush2.msra.mxu0 0.0
        %315 = vmatprep.subr.mxu0 0.0
        %316 = vmatpush2.msra.mxu0 0.0
        %317 = vmatprep.subr.mxu0 0.0
        %318 = vmatpush2.msra.mxu0 0.0
        %319 = vmatprep.subr.mxu0 0.0
        %320 = vmatpush2.msra.mxu0 0.0
        %321 = vmatprep.subr.mxu0 0.0
        %322 = vmatpush2.msra.mxu0 0.0
        %323 = vmatprep.subr.mxu0 0.0
        %324 = vmatpush2.msra.mxu0 0.0
        %325 = vmatprep.subr.mxu0 0.0
        %326 = vmatpush2.msra.mxu0 0.0
        %327 = vmatprep.subr.mxu0 0.0
        %328 = vmatpush2.msra.mxu0 0.0
        %329 = vmatprep.subr.mxu0 0.0
        %330 = vmatpush2.msra.mxu0 0.0
        %331 = vmatprep.subr.mxu0 0.0
        %332 = vmatpush2.msra.mxu0 0.0
        %333 = vmatprep.subr.mxu0 0.0
        %334 = vmatpush2.msra.mxu0 0.0
        %335 = vmatprep.subr.mxu0 0.0
        %336 = vmatpush2.msra.mxu0 0.0
        %337 = vmatprep.subr.mxu0 0.0
        %338 = vmatpush2.msra.mxu0 0.0
        %339 = vmatprep.subr.mxu0 0.0
        %340 = vmatpush2.msra.mxu0 0.0
        %341 = vmatprep.mubr.f32.mxu0 0.0
        %v342 = vand.u32 %v175, 4294901760
        %343 = vmatmul.mubr.f32.gmra.mxu0 %v342
        %v344 = vpop.f32.mrf.mxu0
        %v345 = vadd.f32 %v254, %v344
        %v346 = vpop.f32.mrf.mxu0
        %347 = vmatprep.mubr.f32.mxu0 0.0
        %v348 = vand.u32 %v178, 4294901760
        %349 = vmatmul.mubr.f32.gmra.mxu0 %v348
        %v350 = vpop.f32.mrf.mxu0
        %v351 = vadd.f32 %v264, %v350
        %v352 = vpop.f32.mrf.mxu0
        %353 = vdwg.mxu0
        %354 = vmatprep.subr.mxu0 0.0
        %355 = vmatpush1.msra.mxu0 0.0
        %356 = vmatprep.subr.mxu0 0.0
        %357 = vmatpush1.msra.mxu0 0.0
        %358 = vmatprep.subr.mxu0 0.0
        %359 = vmatpush1.msra.mxu0 0.0
        %360 = vmatprep.subr.mxu0 0.0
        %361 = vmatpush1.msra.mxu0 0.0
        %362 = vmatprep.subr.mxu0 0.0
        %363 = vmatpush1.msra.mxu0 0.0
        %364 = vmatprep.subr.mxu0 0.0
        %365 = vmatpush1.msra.mxu0 0.0
        %366 = vmatprep.subr.mxu0 0.0
        %367 = vmatpush1.msra.mxu0 0.0
        %368 = vmatprep.subr.mxu0 0.0
        %369 = vmatpush1.msra.mxu0 0.0
        %370 = vmatprep.subr.mxu0 0.0
        %371 = vmatpush1.msra.mxu0 0.0
        %372 = vmatprep.subr.mxu0 0.0
        %373 = vmatpush1.msra.mxu0 0.0
        %374 = vmatprep.subr.mxu0 0.0
        %375 = vmatpush1.msra.mxu0 0.0
        %376 = vmatprep.subr.mxu0 0.0
        %377 = vmatpush1.msra.mxu0 0.0
        %378 = vmatprep.subr.mxu0 0.0
        %379 = vmatpush1.msra.mxu0 0.0
        %380 = vmatprep.subr.mxu0 0.0
        %381 = vmatpush1.msra.mxu0 0.0
        %382 = vmatprep.subr.mxu0 0.0
        %v383 = vand.u32 %v172, 4294901760
        %v384 = vsub.f32 %v172, %v383
        %385 = vmatpush1.msra.mxu0 %v384
        %386 = vmatprep.subr.mxu0 0.0
        %v387 = vand.u32 %v171, 4294901760
        %v388 = vsub.f32 %v171, %v387
        %389 = vmatpush1.msra.mxu0 %v388
        %390 = vmatprep.subr.mxu0 0.0
        %391 = vmatpush2.msra.mxu0 0.0
        %392 = vmatprep.subr.mxu0 0.0
        %393 = vmatpush2.msra.mxu0 0.0
        %394 = vmatprep.subr.mxu0 0.0
        %395 = vmatpush2.msra.mxu0 0.0
        %396 = vmatprep.subr.mxu0 0.0
        %397 = vmatpush2.msra.mxu0 0.0
        %398 = vmatprep.subr.mxu0 0.0
        %399 = vmatpush2.msra.mxu0 0.0
        %400 = vmatprep.subr.mxu0 0.0
        %401 = vmatpush2.msra.mxu0 0.0
        %402 = vmatprep.subr.mxu0 0.0
        %403 = vmatpush2.msra.mxu0 0.0
        %404 = vmatprep.subr.mxu0 0.0
        %405 = vmatpush2.msra.mxu0 0.0
        %406 = vmatprep.subr.mxu0 0.0
        %407 = vmatpush2.msra.mxu0 0.0
        %408 = vmatprep.subr.mxu0 0.0
        %409 = vmatpush2.msra.mxu0 0.0
        %410 = vmatprep.subr.mxu0 0.0
        %411 = vmatpush2.msra.mxu0 0.0
        %412 = vmatprep.subr.mxu0 0.0
        %413 = vmatpush2.msra.mxu0 0.0
        %414 = vmatprep.subr.mxu0 0.0
        %415 = vmatpush2.msra.mxu0 0.0
        %416 = vmatprep.subr.mxu0 0.0
        %417 = vmatpush2.msra.mxu0 0.0
        %418 = vmatprep.subr.mxu0 0.0
        %419 = vmatpush2.msra.mxu0 0.0
        %420 = vmatprep.subr.mxu0 0.0
        %421 = vmatpush2.msra.mxu0 0.0
        %422 = vmatprep.mubr.f32.mxu0 0.0
        %v423 = vand.u32 %v175, 4294901760
        %v424 = vsub.f32 %v175, %v423
        %425 = vmatmul.mubr.f32.gmra.mxu0 %v424
        %v426 = vpop.f32.mrf.mxu0
        %v427 = vadd.f32 %v345, %v426
        %v428 = vpop.f32.mrf.mxu0
        %429 = vmatprep.mubr.f32.mxu0 0.0
        %v430 = vand.u32 %v178, 4294901760
        %v431 = vsub.f32 %v178, %v430
        %432 = vmatmul.mubr.f32.gmra.mxu0 %v431
        %v433 = vpop.f32.mrf.mxu0
        %v434 = vadd.f32 %v351, %v433
        %v435 = vpop.f32.mrf.mxu0
        %436 = vdwg.mxu0
        %437 = vmatprep.subr.mxu0 0.0
        %438 = vmatpush1.msra.mxu0 0.0
        %439 = vmatprep.subr.mxu0 0.0
        %440 = vmatpush1.msra.mxu0 0.0
        %441 = vmatprep.subr.mxu0 0.0
        %442 = vmatpush1.msra.mxu0 0.0
        %443 = vmatprep.subr.mxu0 0.0
        %444 = vmatpush1.msra.mxu0 0.0
        %445 = vmatprep.subr.mxu0 0.0
        %446 = vmatpush1.msra.mxu0 0.0
        %447 = vmatprep.subr.mxu0 0.0
        %448 = vmatpush1.msra.mxu0 0.0
        %449 = vmatprep.subr.mxu0 0.0
        %450 = vmatpush1.msra.mxu0 0.0
        %451 = vmatprep.subr.mxu0 0.0
        %452 = vmatpush1.msra.mxu0 0.0
        %453 = vmatprep.subr.mxu0 0.0
        %454 = vmatpush1.msra.mxu0 0.0
        %455 = vmatprep.subr.mxu0 0.0
        %456 = vmatpush1.msra.mxu0 0.0
        %457 = vmatprep.subr.mxu0 0.0
        %458 = vmatpush1.msra.mxu0 0.0
        %459 = vmatprep.subr.mxu0 0.0
        %460 = vmatpush1.msra.mxu0 0.0
        %461 = vmatprep.subr.mxu0 0.0
        %462 = vmatpush1.msra.mxu0 0.0
        %463 = vmatprep.subr.mxu0 0.0
        %464 = vmatpush1.msra.mxu0 0.0
        %465 = vmatprep.subr.mxu0 0.0
        %v466 = vand.u32 %v172, 4294901760
        %467 = vmatpush1.msra.mxu0 %v466
        %468 = vmatprep.subr.mxu0 0.0
        %v469 = vand.u32 %v171, 4294901760
        %470 = vmatpush1.msra.mxu0 %v469
        %471 = vmatprep.subr.mxu0 0.0
        %472 = vmatpush2.msra.mxu0 0.0
        %473 = vmatprep.subr.mxu0 0.0
        %474 = vmatpush2.msra.mxu0 0.0
        %475 = vmatprep.subr.mxu0 0.0
        %476 = vmatpush2.msra.mxu0 0.0
        %477 = vmatprep.subr.mxu0 0.0
        %478 = vmatpush2.msra.mxu0 0.0
        %479 = vmatprep.subr.mxu0 0.0
        %480 = vmatpush2.msra.mxu0 0.0
        %481 = vmatprep.subr.mxu0 0.0
        %482 = vmatpush2.msra.mxu0 0.0
        %483 = vmatprep.subr.mxu0 0.0
        %484 = vmatpush2.msra.mxu0 0.0
        %485 = vmatprep.subr.mxu0 0.0
        %486 = vmatpush2.msra.mxu0 0.0
        %487 = vmatprep.subr.mxu0 0.0
        %488 = vmatpush2.msra.mxu0 0.0
        %489 = vmatprep.subr.mxu0 0.0
        %490 = vmatpush2.msra.mxu0 0.0
        %491 = vmatprep.subr.mxu0 0.0
        %492 = vmatpush2.msra.mxu0 0.0
        %493 = vmatprep.subr.mxu0 0.0
        %494 = vmatpush2.msra.mxu0 0.0
        %495 = vmatprep.subr.mxu0 0.0
        %496 = vmatpush2.msra.mxu0 0.0
        %497 = vmatprep.subr.mxu0 0.0
        %498 = vmatpush2.msra.mxu0 0.0
        %499 = vmatprep.subr.mxu0 0.0
        %500 = vmatpush2.msra.mxu0 0.0
        %501 = vmatprep.subr.mxu0 0.0
        %502 = vmatpush2.msra.mxu0 0.0
        %503 = vmatprep.mubr.f32.mxu0 0.0
        %v504 = vand.u32 %v175, 4294901760
        %v505 = vsub.f32 %v175, %v504
        %v506 = vand.u32 %v505, 4294901760
        %507 = vmatmul.mubr.f32.gmra.mxu0 %v506
        %v508 = vpop.f32.mrf.mxu0
        %v509 = vadd.f32 %v427, %v508
        %v510 = vpop.f32.mrf.mxu0
        %511 = vmatprep.mubr.f32.mxu0 0.0
        %v512 = vand.u32 %v178, 4294901760
        %v513 = vsub.f32 %v178, %v512
        %v514 = vand.u32 %v513, 4294901760
        %515 = vmatmul.mubr.f32.gmra.mxu0 %v514
        %v516 = vpop.f32.mrf.mxu0
        %v517 = vadd.f32 %v434, %v516
        %v518 = vpop.f32.mrf.mxu0
        %519 = vdwg.mxu0
        %520 = vmatprep.subr.mxu0 0.0
        %521 = vmatpush1.msra.mxu0 0.0
        %522 = vmatprep.subr.mxu0 0.0
        %523 = vmatpush1.msra.mxu0 0.0
        %524 = vmatprep.subr.mxu0 0.0
        %525 = vmatpush1.msra.mxu0 0.0
        %526 = vmatprep.subr.mxu0 0.0
        %527 = vmatpush1.msra.mxu0 0.0
        %528 = vmatprep.subr.mxu0 0.0
        %529 = vmatpush1.msra.mxu0 0.0
        %530 = vmatprep.subr.mxu0 0.0
        %531 = vmatpush1.msra.mxu0 0.0
        %532 = vmatprep.subr.mxu0 0.0
        %533 = vmatpush1.msra.mxu0 0.0
        %534 = vmatprep.subr.mxu0 0.0
        %535 = vmatpush1.msra.mxu0 0.0
        %536 = vmatprep.subr.mxu0 0.0
        %537 = vmatpush1.msra.mxu0 0.0
        %538 = vmatprep.subr.mxu0 0.0
        %539 = vmatpush1.msra.mxu0 0.0
        %540 = vmatprep.subr.mxu0 0.0
        %541 = vmatpush1.msra.mxu0 0.0
        %542 = vmatprep.subr.mxu0 0.0
        %543 = vmatpush1.msra.mxu0 0.0
        %544 = vmatprep.subr.mxu0 0.0
        %545 = vmatpush1.msra.mxu0 0.0
        %546 = vmatprep.subr.mxu0 0.0
        %547 = vmatpush1.msra.mxu0 0.0
        %548 = vmatprep.subr.mxu0 0.0
        %v549 = vand.u32 %v172, 4294901760
        %v550 = vsub.f32 %v172, %v549
        %v551 = vand.u32 %v550, 4294901760
        %552 = vmatpush1.msra.mxu0 %v551
        %553 = vmatprep.subr.mxu0 0.0
        %v554 = vand.u32 %v171, 4294901760
        %v555 = vsub.f32 %v171, %v554
        %v556 = vand.u32 %v555, 4294901760
        %557 = vmatpush1.msra.mxu0 %v556
        %558 = vmatprep.subr.mxu0 0.0
        %559 = vmatpush2.msra.mxu0 0.0
        %560 = vmatprep.subr.mxu0 0.0
        %561 = vmatpush2.msra.mxu0 0.0
        %562 = vmatprep.subr.mxu0 0.0
        %563 = vmatpush2.msra.mxu0 0.0
        %564 = vmatprep.subr.mxu0 0.0
        %565 = vmatpush2.msra.mxu0 0.0
        %566 = vmatprep.subr.mxu0 0.0
        %567 = vmatpush2.msra.mxu0 0.0
        %568 = vmatprep.subr.mxu0 0.0
        %569 = vmatpush2.msra.mxu0 0.0
        %570 = vmatprep.subr.mxu0 0.0
        %571 = vmatpush2.msra.mxu0 0.0
        %572 = vmatprep.subr.mxu0 0.0
        %573 = vmatpush2.msra.mxu0 0.0
        %574 = vmatprep.subr.mxu0 0.0
        %575 = vmatpush2.msra.mxu0 0.0
        %576 = vmatprep.subr.mxu0 0.0
        %577 = vmatpush2.msra.mxu0 0.0
        %578 = vmatprep.subr.mxu0 0.0
        %579 = vmatpush2.msra.mxu0 0.0
        %580 = vmatprep.subr.mxu0 0.0
        %581 = vmatpush2.msra.mxu0 0.0
        %582 = vmatprep.subr.mxu0 0.0
        %583 = vmatpush2.msra.mxu0 0.0
        %584 = vmatprep.subr.mxu0 0.0
        %585 = vmatpush2.msra.mxu0 0.0
        %586 = vmatprep.subr.mxu0 0.0
        %587 = vmatpush2.msra.mxu0 0.0
        %588 = vmatprep.subr.mxu0 0.0
        %589 = vmatpush2.msra.mxu0 0.0
        %590 = vmatprep.mubr.f32.mxu0 0.0
        %v591 = vand.u32 %v175, 4294901760
        %592 = vmatmul.mubr.f32.gmra.mxu0 %v591
        %v593 = vpop.f32.mrf.mxu0
        %v594 = vadd.f32 %v509, %v593
        %v595 = vpop.f32.mrf.mxu0
        %596 = vmatprep.mubr.f32.mxu0 0.0
        %v597 = vand.u32 %v178, 4294901760
        %598 = vmatmul.mubr.f32.gmra.mxu0 %v597
        %v599 = vpop.f32.mrf.mxu0
        %v600 = vadd.f32 %v517, %v599
        %v601 = vpop.f32.mrf.mxu0
        %602 = vdwg.mxu0
        %603 = vmatprep.subr.mxu0 0.0
        %604 = vmatpush1.msra.mxu0 0.0
        %605 = vmatprep.subr.mxu0 0.0
        %606 = vmatpush1.msra.mxu0 0.0
        %607 = vmatprep.subr.mxu0 0.0
        %608 = vmatpush1.msra.mxu0 0.0
        %609 = vmatprep.subr.mxu0 0.0
        %610 = vmatpush1.msra.mxu0 0.0
        %611 = vmatprep.subr.mxu0 0.0
        %612 = vmatpush1.msra.mxu0 0.0
        %613 = vmatprep.subr.mxu0 0.0
        %614 = vmatpush1.msra.mxu0 0.0
        %615 = vmatprep.subr.mxu0 0.0
        %616 = vmatpush1.msra.mxu0 0.0
        %617 = vmatprep.subr.mxu0 0.0
        %618 = vmatpush1.msra.mxu0 0.0
        %619 = vmatprep.subr.mxu0 0.0
        %620 = vmatpush1.msra.mxu0 0.0
        %621 = vmatprep.subr.mxu0 0.0
        %622 = vmatpush1.msra.mxu0 0.0
        %623 = vmatprep.subr.mxu0 0.0
        %624 = vmatpush1.msra.mxu0 0.0
        %625 = vmatprep.subr.mxu0 0.0
        %626 = vmatpush1.msra.mxu0 0.0
        %627 = vmatprep.subr.mxu0 0.0
        %628 = vmatpush1.msra.mxu0 0.0
        %629 = vmatprep.subr.mxu0 0.0
        %630 = vmatpush1.msra.mxu0 0.0
        %631 = vmatprep.subr.mxu0 0.0
        %v632 = vand.u32 %v172, 4294901760
        %633 = vmatpush1.msra.mxu0 %v632
        %634 = vmatprep.subr.mxu0 0.0
        %v635 = vand.u32 %v171, 4294901760
        %636 = vmatpush1.msra.mxu0 %v635
        %637 = vmatprep.subr.mxu0 0.0
        %638 = vmatpush2.msra.mxu0 0.0
        %639 = vmatprep.subr.mxu0 0.0
        %640 = vmatpush2.msra.mxu0 0.0
        %641 = vmatprep.subr.mxu0 0.0
        %642 = vmatpush2.msra.mxu0 0.0
        %643 = vmatprep.subr.mxu0 0.0
        %644 = vmatpush2.msra.mxu0 0.0
        %645 = vmatprep.subr.mxu0 0.0
        %646 = vmatpush2.msra.mxu0 0.0
        %647 = vmatprep.subr.mxu0 0.0
        %648 = vmatpush2.msra.mxu0 0.0
        %649 = vmatprep.subr.mxu0 0.0
        %650 = vmatpush2.msra.mxu0 0.0
        %651 = vmatprep.subr.mxu0 0.0
        %652 = vmatpush2.msra.mxu0 0.0
        %653 = vmatprep.subr.mxu0 0.0
        %654 = vmatpush2.msra.mxu0 0.0
        %655 = vmatprep.subr.mxu0 0.0
        %656 = vmatpush2.msra.mxu0 0.0
        %657 = vmatprep.subr.mxu0 0.0
        %658 = vmatpush2.msra.mxu0 0.0
        %659 = vmatprep.subr.mxu0 0.0
        %660 = vmatpush2.msra.mxu0 0.0
        %661 = vmatprep.subr.mxu0 0.0
        %662 = vmatpush2.msra.mxu0 0.0
        %663 = vmatprep.subr.mxu0 0.0
        %664 = vmatpush2.msra.mxu0 0.0
        %665 = vmatprep.subr.mxu0 0.0
        %666 = vmatpush2.msra.mxu0 0.0
        %667 = vmatprep.subr.mxu0 0.0
        %668 = vmatpush2.msra.mxu0 0.0
        %669 = vmatprep.mubr.f32.mxu0 0.0
        %v670 = vand.u32 %v175, 4294901760
        %671 = vmatmul.mubr.f32.gmra.mxu0 %v670
        %v672 = vpop.f32.mrf.mxu0
        %v673 = vadd.f32 %v594, %v672
        %v674 = vpop.f32.mrf.mxu0
        %675 = vmatprep.mubr.f32.mxu0 0.0
        %v676 = vand.u32 %v178, 4294901760
        %677 = vmatmul.mubr.f32.gmra.mxu0 %v676
        %v678 = vpop.f32.mrf.mxu0
        %v679 = vadd.f32 %v600, %v678
        %v680 = vpop.f32.mrf.mxu0
        %681 = vdwg.mxu0
        %vm682 = vcmask 64512
        %683 = vst.msk [vmem:[%s157] sm:$0xff] %vm682, %v673
        %684 = vst.msk [vmem:[%s157 + $0x8] sm:$0xff] %vm682, %v679
        %687 = vrot.lane.b32.xlu0 %v673, 120
        %v688 = vpop.permute.xlu0 %687
        %689 = vrot.lane.b32.xlu0 %v679, 120
        %v690 = vpop.permute.xlu0 %689
        %s693 = scalar_lea.vmem %s157, 16 [#allocation2]
        %694 = vst.msk [vmem:[%s693] sm:$0xff] %vm682, %v688
        %695 = vst.msk [vmem:[%s693 + $0x8] sm:$0xff] %vm682, %v690
        %696 = vrot.lane.b32.xlu0 %v169, 112
        %v697 = vpop.permute.xlu0 %696
        %698 = vrot.lane.b32.xlu0 %v170, 112
        %v699 = vpop.permute.xlu0 %698
        %v700 = vsel %vm173, %v697, 0
        %v702 = vsel %vm173, %v699, 0
        %704 = vmatprep.subr.mxu0 0.0
        %705 = vmatpush1.msra.mxu0 0.0
        %706 = vmatprep.subr.mxu0 0.0
        %707 = vmatpush1.msra.mxu0 0.0
        %708 = vmatprep.subr.mxu0 0.0
        %709 = vmatpush1.msra.mxu0 0.0
        %710 = vmatprep.subr.mxu0 0.0
        %711 = vmatpush1.msra.mxu0 0.0
        %712 = vmatprep.subr.mxu0 0.0
        %713 = vmatpush1.msra.mxu0 0.0
        %714 = vmatprep.subr.mxu0 0.0
        %715 = vmatpush1.msra.mxu0 0.0
        %716 = vmatprep.subr.mxu0 0.0
        %717 = vmatpush1.msra.mxu0 0.0
        %718 = vmatprep.subr.mxu0 0.0
        %719 = vmatpush1.msra.mxu0 0.0
        %720 = vmatprep.subr.mxu0 0.0
        %721 = vmatpush1.msra.mxu0 0.0
        %722 = vmatprep.subr.mxu0 0.0
        %723 = vmatpush1.msra.mxu0 0.0
        %724 = vmatprep.subr.mxu0 0.0
        %725 = vmatpush1.msra.mxu0 0.0
        %726 = vmatprep.subr.mxu0 0.0
        %727 = vmatpush1.msra.mxu0 0.0
        %728 = vmatprep.subr.mxu0 0.0
        %729 = vmatpush1.msra.mxu0 0.0
        %730 = vmatprep.subr.mxu0 0.0
        %731 = vmatpush1.msra.mxu0 0.0
        %732 = vmatprep.subr.mxu0 0.0
        %v733 = vand.u32 %v172, 4294901760
        %734 = vmatpush1.msra.mxu0 %v733
        %735 = vmatprep.subr.mxu0 0.0
        %v736 = vand.u32 %v171, 4294901760
        %737 = vmatpush1.msra.mxu0 %v736
        %738 = vmatprep.subr.mxu0 0.0
        %739 = vmatpush2.msra.mxu0 0.0
        %740 = vmatprep.subr.mxu0 0.0
        %741 = vmatpush2.msra.mxu0 0.0
        %742 = vmatprep.subr.mxu0 0.0
        %743 = vmatpush2.msra.mxu0 0.0
        %744 = vmatprep.subr.mxu0 0.0
        %745 = vmatpush2.msra.mxu0 0.0
        %746 = vmatprep.subr.mxu0 0.0
        %747 = vmatpush2.msra.mxu0 0.0
        %748 = vmatprep.subr.mxu0 0.0
        %749 = vmatpush2.msra.mxu0 0.0
        %750 = vmatprep.subr.mxu0 0.0
        %751 = vmatpush2.msra.mxu0 0.0
        %752 = vmatprep.subr.mxu0 0.0
        %753 = vmatpush2.msra.mxu0 0.0
        %754 = vmatprep.subr.mxu0 0.0
        %755 = vmatpush2.msra.mxu0 0.0
        %756 = vmatprep.subr.mxu0 0.0
        %757 = vmatpush2.msra.mxu0 0.0
        %758 = vmatprep.subr.mxu0 0.0
        %759 = vmatpush2.msra.mxu0 0.0
        %760 = vmatprep.subr.mxu0 0.0
        %761 = vmatpush2.msra.mxu0 0.0
        %762 = vmatprep.subr.mxu0 0.0
        %763 = vmatpush2.msra.mxu0 0.0
        %764 = vmatprep.subr.mxu0 0.0
        %765 = vmatpush2.msra.mxu0 0.0
        %766 = vmatprep.subr.mxu0 0.0
        %767 = vmatpush2.msra.mxu0 0.0
        %768 = vmatprep.subr.mxu0 0.0
        %769 = vmatpush2.msra.mxu0 0.0
        %770 = vmatprep.mubr.f32.mxu0 0.0
        %v771 = vand.u32 %v700, 4294901760
        %v772 = vsub.f32 %v700, %v771
        %v773 = vand.u32 %v772, 4294901760
        %v774 = vsub.f32 %v772, %v773
        %v775 = vand.u32 %v774, 4294901760
        %776 = vmatmul.mubr.f32.gmra.mxu0 %v775
        %v777 = vpop.f32.mrf.mxu0
        %v778 = vadd.f32 0.0, %v777
        %v779 = vpop.f32.mrf.mxu0
        %780 = vmatprep.mubr.f32.mxu0 0.0
        %v781 = vand.u32 %v702, 4294901760
        %v782 = vsub.f32 %v702, %v781
        %v783 = vand.u32 %v782, 4294901760
        %v784 = vsub.f32 %v782, %v783
        %v785 = vand.u32 %v784, 4294901760
        %786 = vmatmul.mubr.f32.gmra.mxu0 %v785
        %v787 = vpop.f32.mrf.mxu0
        %v788 = vadd.f32 0.0, %v787
        %v789 = vpop.f32.mrf.mxu0
        %790 = vdwg.mxu0
        %791 = vmatprep.subr.mxu0 0.0
        %792 = vmatpush1.msra.mxu0 0.0
        %793 = vmatprep.subr.mxu0 0.0
        %794 = vmatpush1.msra.mxu0 0.0
        %795 = vmatprep.subr.mxu0 0.0
        %796 = vmatpush1.msra.mxu0 0.0
        %797 = vmatprep.subr.mxu0 0.0
        %798 = vmatpush1.msra.mxu0 0.0
        %799 = vmatprep.subr.mxu0 0.0
        %800 = vmatpush1.msra.mxu0 0.0
        %801 = vmatprep.subr.mxu0 0.0
        %802 = vmatpush1.msra.mxu0 0.0
        %803 = vmatprep.subr.mxu0 0.0
        %804 = vmatpush1.msra.mxu0 0.0
        %805 = vmatprep.subr.mxu0 0.0
        %806 = vmatpush1.msra.mxu0 0.0
        %807 = vmatprep.subr.mxu0 0.0
        %808 = vmatpush1.msra.mxu0 0.0
        %809 = vmatprep.subr.mxu0 0.0
        %810 = vmatpush1.msra.mxu0 0.0
        %811 = vmatprep.subr.mxu0 0.0
        %812 = vmatpush1.msra.mxu0 0.0
        %813 = vmatprep.subr.mxu0 0.0
        %814 = vmatpush1.msra.mxu0 0.0
        %815 = vmatprep.subr.mxu0 0.0
        %816 = vmatpush1.msra.mxu0 0.0
        %817 = vmatprep.subr.mxu0 0.0
        %818 = vmatpush1.msra.mxu0 0.0
        %819 = vmatprep.subr.mxu0 0.0
        %v820 = vand.u32 %v172, 4294901760
        %v821 = vsub.f32 %v172, %v820
        %v822 = vand.u32 %v821, 4294901760
        %v823 = vsub.f32 %v821, %v822
        %v824 = vand.u32 %v823, 4294901760
        %825 = vmatpush1.msra.mxu0 %v824
        %826 = vmatprep.subr.mxu0 0.0
        %v827 = vand.u32 %v171, 4294901760
        %v828 = vsub.f32 %v171, %v827
        %v829 = vand.u32 %v828, 4294901760
        %v830 = vsub.f32 %v828, %v829
        %v831 = vand.u32 %v830, 4294901760
        %832 = vmatpush1.msra.mxu0 %v831
        %833 = vmatprep.subr.mxu0 0.0
        %834 = vmatpush2.msra.mxu0 0.0
        %835 = vmatprep.subr.mxu0 0.0
        %836 = vmatpush2.msra.mxu0 0.0
        %837 = vmatprep.subr.mxu0 0.0
        %838 = vmatpush2.msra.mxu0 0.0
        %839 = vmatprep.subr.mxu0 0.0
        %840 = vmatpush2.msra.mxu0 0.0
        %841 = vmatprep.subr.mxu0 0.0
        %842 = vmatpush2.msra.mxu0 0.0
        %843 = vmatprep.subr.mxu0 0.0
        %844 = vmatpush2.msra.mxu0 0.0
        %845 = vmatprep.subr.mxu0 0.0
        %846 = vmatpush2.msra.mxu0 0.0
        %847 = vmatprep.subr.mxu0 0.0
        %848 = vmatpush2.msra.mxu0 0.0
        %849 = vmatprep.subr.mxu0 0.0
        %850 = vmatpush2.msra.mxu0 0.0
        %851 = vmatprep.subr.mxu0 0.0
        %852 = vmatpush2.msra.mxu0 0.0
        %853 = vmatprep.subr.mxu0 0.0
        %854 = vmatpush2.msra.mxu0 0.0
        %855 = vmatprep.subr.mxu0 0.0
        %856 = vmatpush2.msra.mxu0 0.0
        %857 = vmatprep.subr.mxu0 0.0
        %858 = vmatpush2.msra.mxu0 0.0
        %859 = vmatprep.subr.mxu0 0.0
        %860 = vmatpush2.msra.mxu0 0.0
        %861 = vmatprep.subr.mxu0 0.0
        %862 = vmatpush2.msra.mxu0 0.0
        %863 = vmatprep.subr.mxu0 0.0
        %864 = vmatpush2.msra.mxu0 0.0
        %865 = vmatprep.mubr.f32.mxu0 0.0
        %v866 = vand.u32 %v700, 4294901760
        %867 = vmatmul.mubr.f32.gmra.mxu0 %v866
        %v868 = vpop.f32.mrf.mxu0
        %v869 = vadd.f32 %v778, %v868
        %v870 = vpop.f32.mrf.mxu0
        %871 = vmatprep.mubr.f32.mxu0 0.0
        %v872 = vand.u32 %v702, 4294901760
        %873 = vmatmul.mubr.f32.gmra.mxu0 %v872
        %v874 = vpop.f32.mrf.mxu0
        %v875 = vadd.f32 %v788, %v874
        %v876 = vpop.f32.mrf.mxu0
        %877 = vdwg.mxu0
        %878 = vmatprep.subr.mxu0 0.0
        %879 = vmatpush1.msra.mxu0 0.0
        %880 = vmatprep.subr.mxu0 0.0
        %881 = vmatpush1.msra.mxu0 0.0
        %882 = vmatprep.subr.mxu0 0.0
        %883 = vmatpush1.msra.mxu0 0.0
        %884 = vmatprep.subr.mxu0 0.0
        %885 = vmatpush1.msra.mxu0 0.0
        %886 = vmatprep.subr.mxu0 0.0
        %887 = vmatpush1.msra.mxu0 0.0
        %888 = vmatprep.subr.mxu0 0.0
        %889 = vmatpush1.msra.mxu0 0.0
        %890 = vmatprep.subr.mxu0 0.0
        %891 = vmatpush1.msra.mxu0 0.0
        %892 = vmatprep.subr.mxu0 0.0
        %893 = vmatpush1.msra.mxu0 0.0
        %894 = vmatprep.subr.mxu0 0.0
        %895 = vmatpush1.msra.mxu0 0.0
        %896 = vmatprep.subr.mxu0 0.0
        %897 = vmatpush1.msra.mxu0 0.0
        %898 = vmatprep.subr.mxu0 0.0
        %899 = vmatpush1.msra.mxu0 0.0
        %900 = vmatprep.subr.mxu0 0.0
        %901 = vmatpush1.msra.mxu0 0.0
        %902 = vmatprep.subr.mxu0 0.0
        %903 = vmatpush1.msra.mxu0 0.0
        %904 = vmatprep.subr.mxu0 0.0
        %905 = vmatpush1.msra.mxu0 0.0
        %906 = vmatprep.subr.mxu0 0.0
        %v907 = vand.u32 %v172, 4294901760
        %v908 = vsub.f32 %v172, %v907
        %909 = vmatpush1.msra.mxu0 %v908
        %910 = vmatprep.subr.mxu0 0.0
        %v911 = vand.u32 %v171, 4294901760
        %v912 = vsub.f32 %v171, %v911
        %913 = vmatpush1.msra.mxu0 %v912
        %914 = vmatprep.subr.mxu0 0.0
        %915 = vmatpush2.msra.mxu0 0.0
        %916 = vmatprep.subr.mxu0 0.0
        %917 = vmatpush2.msra.mxu0 0.0
        %918 = vmatprep.subr.mxu0 0.0
        %919 = vmatpush2.msra.mxu0 0.0
        %920 = vmatprep.subr.mxu0 0.0
        %921 = vmatpush2.msra.mxu0 0.0
        %922 = vmatprep.subr.mxu0 0.0
        %923 = vmatpush2.msra.mxu0 0.0
        %924 = vmatprep.subr.mxu0 0.0
        %925 = vmatpush2.msra.mxu0 0.0
        %926 = vmatprep.subr.mxu0 0.0
        %927 = vmatpush2.msra.mxu0 0.0
        %928 = vmatprep.subr.mxu0 0.0
        %929 = vmatpush2.msra.mxu0 0.0
        %930 = vmatprep.subr.mxu0 0.0
        %931 = vmatpush2.msra.mxu0 0.0
        %932 = vmatprep.subr.mxu0 0.0
        %933 = vmatpush2.msra.mxu0 0.0
        %934 = vmatprep.subr.mxu0 0.0
        %935 = vmatpush2.msra.mxu0 0.0
        %936 = vmatprep.subr.mxu0 0.0
        %937 = vmatpush2.msra.mxu0 0.0
        %938 = vmatprep.subr.mxu0 0.0
        %939 = vmatpush2.msra.mxu0 0.0
        %940 = vmatprep.subr.mxu0 0.0
        %941 = vmatpush2.msra.mxu0 0.0
        %942 = vmatprep.subr.mxu0 0.0
        %943 = vmatpush2.msra.mxu0 0.0
        %944 = vmatprep.subr.mxu0 0.0
        %945 = vmatpush2.msra.mxu0 0.0
        %946 = vmatprep.mubr.f32.mxu0 0.0
        %v947 = vand.u32 %v700, 4294901760
        %v948 = vsub.f32 %v700, %v947
        %949 = vmatmul.mubr.f32.gmra.mxu0 %v948
        %v950 = vpop.f32.mrf.mxu0
        %v951 = vadd.f32 %v869, %v950
        %v952 = vpop.f32.mrf.mxu0
        %953 = vmatprep.mubr.f32.mxu0 0.0
        %v954 = vand.u32 %v702, 4294901760
        %v955 = vsub.f32 %v702, %v954
        %956 = vmatmul.mubr.f32.gmra.mxu0 %v955
        %v957 = vpop.f32.mrf.mxu0
        %v958 = vadd.f32 %v875, %v957
        %v959 = vpop.f32.mrf.mxu0
        %960 = vdwg.mxu0
        %961 = vmatprep.subr.mxu0 0.0
        %962 = vmatpush1.msra.mxu0 0.0
        %963 = vmatprep.subr.mxu0 0.0
        %964 = vmatpush1.msra.mxu0 0.0
        %965 = vmatprep.subr.mxu0 0.0
        %966 = vmatpush1.msra.mxu0 0.0
        %967 = vmatprep.subr.mxu0 0.0
        %968 = vmatpush1.msra.mxu0 0.0
        %969 = vmatprep.subr.mxu0 0.0
        %970 = vmatpush1.msra.mxu0 0.0
        %971 = vmatprep.subr.mxu0 0.0
        %972 = vmatpush1.msra.mxu0 0.0
        %973 = vmatprep.subr.mxu0 0.0
        %974 = vmatpush1.msra.mxu0 0.0
        %975 = vmatprep.subr.mxu0 0.0
        %976 = vmatpush1.msra.mxu0 0.0
        %977 = vmatprep.subr.mxu0 0.0
        %978 = vmatpush1.msra.mxu0 0.0
        %979 = vmatprep.subr.mxu0 0.0
        %980 = vmatpush1.msra.mxu0 0.0
        %981 = vmatprep.subr.mxu0 0.0
        %982 = vmatpush1.msra.mxu0 0.0
        %983 = vmatprep.subr.mxu0 0.0
        %984 = vmatpush1.msra.mxu0 0.0
        %985 = vmatprep.subr.mxu0 0.0
        %986 = vmatpush1.msra.mxu0 0.0
        %987 = vmatprep.subr.mxu0 0.0
        %988 = vmatpush1.msra.mxu0 0.0
        %989 = vmatprep.subr.mxu0 0.0
        %v990 = vand.u32 %v172, 4294901760
        %991 = vmatpush1.msra.mxu0 %v990
        %992 = vmatprep.subr.mxu0 0.0
        %v993 = vand.u32 %v171, 4294901760
        %994 = vmatpush1.msra.mxu0 %v993
        %995 = vmatprep.subr.mxu0 0.0
        %996 = vmatpush2.msra.mxu0 0.0
        %997 = vmatprep.subr.mxu0 0.0
        %998 = vmatpush2.msra.mxu0 0.0
        %999 = vmatprep.subr.mxu0 0.0
        %1000 = vmatpush2.msra.mxu0 0.0
        %1001 = vmatprep.subr.mxu0 0.0
        %1002 = vmatpush2.msra.mxu0 0.0
        %1003 = vmatprep.subr.mxu0 0.0
        %1004 = vmatpush2.msra.mxu0 0.0
        %1005 = vmatprep.subr.mxu0 0.0
        %1006 = vmatpush2.msra.mxu0 0.0
        %1007 = vmatprep.subr.mxu0 0.0
        %1008 = vmatpush2.msra.mxu0 0.0
        %1009 = vmatprep.subr.mxu0 0.0
        %1010 = vmatpush2.msra.mxu0 0.0
        %1011 = vmatprep.subr.mxu0 0.0
        %1012 = vmatpush2.msra.mxu0 0.0
        %1013 = vmatprep.subr.mxu0 0.0
        %1014 = vmatpush2.msra.mxu0 0.0
        %1015 = vmatprep.subr.mxu0 0.0
        %1016 = vmatpush2.msra.mxu0 0.0
        %1017 = vmatprep.subr.mxu0 0.0
        %1018 = vmatpush2.msra.mxu0 0.0
        %1019 = vmatprep.subr.mxu0 0.0
        %1020 = vmatpush2.msra.mxu0 0.0
        %1021 = vmatprep.subr.mxu0 0.0
        %1022 = vmatpush2.msra.mxu0 0.0
        %1023 = vmatprep.subr.mxu0 0.0
        %1024 = vmatpush2.msra.mxu0 0.0
        %1025 = vmatprep.subr.mxu0 0.0
        %1026 = vmatpush2.msra.mxu0 0.0
        %1027 = vmatprep.mubr.f32.mxu0 0.0
        %v1028 = vand.u32 %v700, 4294901760
        %v1029 = vsub.f32 %v700, %v1028
        %v1030 = vand.u32 %v1029, 4294901760
        %1031 = vmatmul.mubr.f32.gmra.mxu0 %v1030
        %v1032 = vpop.f32.mrf.mxu0
        %v1033 = vadd.f32 %v951, %v1032
        %v1034 = vpop.f32.mrf.mxu0
        %1035 = vmatprep.mubr.f32.mxu0 0.0
        %v1036 = vand.u32 %v702, 4294901760
        %v1037 = vsub.f32 %v702, %v1036
        %v1038 = vand.u32 %v1037, 4294901760
        %1039 = vmatmul.mubr.f32.gmra.mxu0 %v1038
        %v1040 = vpop.f32.mrf.mxu0
        %v1041 = vadd.f32 %v958, %v1040
        %v1042 = vpop.f32.mrf.mxu0
        %1043 = vdwg.mxu0
        %1044 = vmatprep.subr.mxu0 0.0
        %1045 = vmatpush1.msra.mxu0 0.0
        %1046 = vmatprep.subr.mxu0 0.0
        %1047 = vmatpush1.msra.mxu0 0.0
        %1048 = vmatprep.subr.mxu0 0.0
        %1049 = vmatpush1.msra.mxu0 0.0
        %1050 = vmatprep.subr.mxu0 0.0
        %1051 = vmatpush1.msra.mxu0 0.0
        %1052 = vmatprep.subr.mxu0 0.0
        %1053 = vmatpush1.msra.mxu0 0.0
        %1054 = vmatprep.subr.mxu0 0.0
        %1055 = vmatpush1.msra.mxu0 0.0
        %1056 = vmatprep.subr.mxu0 0.0
        %1057 = vmatpush1.msra.mxu0 0.0
        %1058 = vmatprep.subr.mxu0 0.0
        %1059 = vmatpush1.msra.mxu0 0.0
        %1060 = vmatprep.subr.mxu0 0.0
        %1061 = vmatpush1.msra.mxu0 0.0
        %1062 = vmatprep.subr.mxu0 0.0
        %1063 = vmatpush1.msra.mxu0 0.0
        %1064 = vmatprep.subr.mxu0 0.0
        %1065 = vmatpush1.msra.mxu0 0.0
        %1066 = vmatprep.subr.mxu0 0.0
        %1067 = vmatpush1.msra.mxu0 0.0
        %1068 = vmatprep.subr.mxu0 0.0
        %1069 = vmatpush1.msra.mxu0 0.0
        %1070 = vmatprep.subr.mxu0 0.0
        %1071 = vmatpush1.msra.mxu0 0.0
        %1072 = vmatprep.subr.mxu0 0.0
        %v1073 = vand.u32 %v172, 4294901760
        %v1074 = vsub.f32 %v172, %v1073
        %v1075 = vand.u32 %v1074, 4294901760
        %1076 = vmatpush1.msra.mxu0 %v1075
        %1077 = vmatprep.subr.mxu0 0.0
        %v1078 = vand.u32 %v171, 4294901760
        %v1079 = vsub.f32 %v171, %v1078
        %v1080 = vand.u32 %v1079, 4294901760
        %1081 = vmatpush1.msra.mxu0 %v1080
        %1082 = vmatprep.subr.mxu0 0.0
        %1083 = vmatpush2.msra.mxu0 0.0
        %1084 = vmatprep.subr.mxu0 0.0
        %1085 = vmatpush2.msra.mxu0 0.0
        %1086 = vmatprep.subr.mxu0 0.0
        %1087 = vmatpush2.msra.mxu0 0.0
        %1088 = vmatprep.subr.mxu0 0.0
        %1089 = vmatpush2.msra.mxu0 0.0
        %1090 = vmatprep.subr.mxu0 0.0
        %1091 = vmatpush2.msra.mxu0 0.0
        %1092 = vmatprep.subr.mxu0 0.0
        %1093 = vmatpush2.msra.mxu0 0.0
        %1094 = vmatprep.subr.mxu0 0.0
        %1095 = vmatpush2.msra.mxu0 0.0
        %1096 = vmatprep.subr.mxu0 0.0
        %1097 = vmatpush2.msra.mxu0 0.0
        %1098 = vmatprep.subr.mxu0 0.0
        %1099 = vmatpush2.msra.mxu0 0.0
        %1100 = vmatprep.subr.mxu0 0.0
        %1101 = vmatpush2.msra.mxu0 0.0
        %1102 = vmatprep.subr.mxu0 0.0
        %1103 = vmatpush2.msra.mxu0 0.0
        %1104 = vmatprep.subr.mxu0 0.0
        %1105 = vmatpush2.msra.mxu0 0.0
        %1106 = vmatprep.subr.mxu0 0.0
        %1107 = vmatpush2.msra.mxu0 0.0
        %1108 = vmatprep.subr.mxu0 0.0
        %1109 = vmatpush2.msra.mxu0 0.0
        %1110 = vmatprep.subr.mxu0 0.0
        %1111 = vmatpush2.msra.mxu0 0.0
        %1112 = vmatprep.subr.mxu0 0.0
        %1113 = vmatpush2.msra.mxu0 0.0
        %1114 = vmatprep.mubr.f32.mxu0 0.0
        %v1115 = vand.u32 %v700, 4294901760
        %1116 = vmatmul.mubr.f32.gmra.mxu0 %v1115
        %v1117 = vpop.f32.mrf.mxu0
        %v1118 = vadd.f32 %v1033, %v1117
        %v1119 = vpop.f32.mrf.mxu0
        %1120 = vmatprep.mubr.f32.mxu0 0.0
        %v1121 = vand.u32 %v702, 4294901760
        %1122 = vmatmul.mubr.f32.gmra.mxu0 %v1121
        %v1123 = vpop.f32.mrf.mxu0
        %v1124 = vadd.f32 %v1041, %v1123
        %v1125 = vpop.f32.mrf.mxu0
        %1126 = vdwg.mxu0
        %1127 = vmatprep.subr.mxu0 0.0
        %1128 = vmatpush1.msra.mxu0 0.0
        %1129 = vmatprep.subr.mxu0 0.0
        %1130 = vmatpush1.msra.mxu0 0.0
        %1131 = vmatprep.subr.mxu0 0.0
        %1132 = vmatpush1.msra.mxu0 0.0
        %1133 = vmatprep.subr.mxu0 0.0
        %1134 = vmatpush1.msra.mxu0 0.0
        %1135 = vmatprep.subr.mxu0 0.0
        %1136 = vmatpush1.msra.mxu0 0.0
        %1137 = vmatprep.subr.mxu0 0.0
        %1138 = vmatpush1.msra.mxu0 0.0
        %1139 = vmatprep.subr.mxu0 0.0
        %1140 = vmatpush1.msra.mxu0 0.0
        %1141 = vmatprep.subr.mxu0 0.0
        %1142 = vmatpush1.msra.mxu0 0.0
        %1143 = vmatprep.subr.mxu0 0.0
        %1144 = vmatpush1.msra.mxu0 0.0
        %1145 = vmatprep.subr.mxu0 0.0
        %1146 = vmatpush1.msra.mxu0 0.0
        %1147 = vmatprep.subr.mxu0 0.0
        %1148 = vmatpush1.msra.mxu0 0.0
        %1149 = vmatprep.subr.mxu0 0.0
        %1150 = vmatpush1.msra.mxu0 0.0
        %1151 = vmatprep.subr.mxu0 0.0
        %1152 = vmatpush1.msra.mxu0 0.0
        %1153 = vmatprep.subr.mxu0 0.0
        %1154 = vmatpush1.msra.mxu0 0.0
        %1155 = vmatprep.subr.mxu0 0.0
        %v1156 = vand.u32 %v172, 4294901760
        %1157 = vmatpush1.msra.mxu0 %v1156
        %1158 = vmatprep.subr.mxu0 0.0
        %v1159 = vand.u32 %v171, 4294901760
        %1160 = vmatpush1.msra.mxu0 %v1159
        %1161 = vmatprep.subr.mxu0 0.0
        %1162 = vmatpush2.msra.mxu0 0.0
        %1163 = vmatprep.subr.mxu0 0.0
        %1164 = vmatpush2.msra.mxu0 0.0
        %1165 = vmatprep.subr.mxu0 0.0
        %1166 = vmatpush2.msra.mxu0 0.0
        %1167 = vmatprep.subr.mxu0 0.0
        %1168 = vmatpush2.msra.mxu0 0.0
        %1169 = vmatprep.subr.mxu0 0.0
        %1170 = vmatpush2.msra.mxu0 0.0
        %1171 = vmatprep.subr.mxu0 0.0
        %1172 = vmatpush2.msra.mxu0 0.0
        %1173 = vmatprep.subr.mxu0 0.0
        %1174 = vmatpush2.msra.mxu0 0.0
        %1175 = vmatprep.subr.mxu0 0.0
        %1176 = vmatpush2.msra.mxu0 0.0
        %1177 = vmatprep.subr.mxu0 0.0
        %1178 = vmatpush2.msra.mxu0 0.0
        %1179 = vmatprep.subr.mxu0 0.0
        %1180 = vmatpush2.msra.mxu0 0.0
        %1181 = vmatprep.subr.mxu0 0.0
        %1182 = vmatpush2.msra.mxu0 0.0
        %1183 = vmatprep.subr.mxu0 0.0
        %1184 = vmatpush2.msra.mxu0 0.0
        %1185 = vmatprep.subr.mxu0 0.0
        %1186 = vmatpush2.msra.mxu0 0.0
        %1187 = vmatprep.subr.mxu0 0.0
        %1188 = vmatpush2.msra.mxu0 0.0
        %1189 = vmatprep.subr.mxu0 0.0
        %1190 = vmatpush2.msra.mxu0 0.0
        %1191 = vmatprep.subr.mxu0 0.0
        %1192 = vmatpush2.msra.mxu0 0.0
        %1193 = vmatprep.mubr.f32.mxu0 0.0
        %v1194 = vand.u32 %v700, 4294901760
        %1195 = vmatmul.mubr.f32.gmra.mxu0 %v1194
        %v1196 = vpop.f32.mrf.mxu0
        %v1197 = vadd.f32 %v1118, %v1196
        %v1198 = vpop.f32.mrf.mxu0
        %1199 = vmatprep.mubr.f32.mxu0 0.0
        %v1200 = vand.u32 %v702, 4294901760
        %1201 = vmatmul.mubr.f32.gmra.mxu0 %v1200
        %v1202 = vpop.f32.mrf.mxu0
        %v1203 = vadd.f32 %v1124, %v1202
        %v1204 = vpop.f32.mrf.mxu0
        %1205 = vdwg.mxu0
        %s1206 = scalar_lea.vmem %s157, 32 [#allocation2]
        %1207 = vst.msk [vmem:[%s1206] sm:$0xff] %vm682, %v1197
        %1208 = vst.msk [vmem:[%s1206 + $0x8] sm:$0xff] %vm682, %v1203
        %1211 = vrot.lane.b32.xlu0 %v1197, 120
        %v1212 = vpop.permute.xlu0 %1211
        %1213 = vrot.lane.b32.xlu0 %v1203, 120
        %v1214 = vpop.permute.xlu0 %1213
        %s1217 = scalar_lea.vmem %s157, 48 [#allocation2]
        %1218 = vst.msk [vmem:[%s1217] sm:$0xff] %vm682, %v1212
        %1219 = vst.msk [vmem:[%s1217 + $0x8] sm:$0xff] %vm682, %v1214
        %s1220 = sand.u32 %s84, 1
        %s1221 = sand.u32 %s84, 1
        %s1222 = smul.addr %s1221, 64
        %s1223 = scalar_lea.vmem [#allocation2], %s1222
        // Predicated region
        $region29: #{reorg_layer_forward.1} parent=27 // pred_check
          %p1224 = pneg %p94
        $region30: #{reorg_layer_forward.1} parent=27 // pred_check_branch
          %1226 = sbr.rel (%p1224) target = $region32
        $region31: #{reorg_layer_forward.1} parent=27 // pred_region
          %s1227 = smul.u32 2, %s18
          %s1228 = smul.addr %s17, 16
          %s1229 = sadd.s32 %s1227, %s1228
          %s1230 = smul.addr %s1229, 8
          %s1231 = scalar_lea.vmem %s2, %s1230
          // Predicated region
          $region33: #{reorg_layer_forward.1} parent=31 // pred_check
            _
          $region34: #{reorg_layer_forward.1} parent=31 // pred_check_branch
            %1233 = sbr.rel (0) target = $region36
          $region35: #{reorg_layer_forward.1} parent=31 // pred_region
            // Predicated region
            $region37: #{reorg_layer_forward.1} parent=35 // pred_check
              _
            $region38: #{reorg_layer_forward.1} parent=35 // pred_check_branch
              %1235 = sbr.rel (0) target = $region40
            $region39: #{reorg_layer_forward.1} parent=35 // pred_region
              // Predicated region
              $region52: #{reorg_layer_forward.1} parent=39 // pred_check
                _
              $region53: #{reorg_layer_forward.1} parent=39 // pred_check_branch
                %1265 = sbr.rel (0) target = $region55
              $region54: #{reorg_layer_forward.1} parent=39 // pred_region
                loop: start=0, step=1, limit=1
                $region56: #{reorg_layer_forward.1} parent=54 // loop_pre_header
                  _
                $region57: #{reorg_layer_forward.1} parent=54 // loop_header
                  %s1267 = sphi 0, %s1271
                  %p1268 = scmp.ge.s32.totalorder %s1267, 1
                  %s1272 = sphi %s1223, %s1223
                  %s1273 = sphi %s1231, %s1231
                $region58: #{reorg_layer_forward.1} parent=54 // loop_header_branch
                  %1270 = sbr.rel (%p1268) target = $region62
                $region59: #{reorg_layer_forward.1} parent=54 // loop_body
                  %v1274 = vld [vmem:[%s1272] sm:$0xff]
                  %1275 = vst [vmem:[%s1273] sm:$0xff] %v1274
                  %v1276 = vld [vmem:[%s1272 + $0x8] sm:$0xff]
                  %1277 = vst [vmem:[%s1273 + $0x8] sm:$0xff] %v1276
                  %v1278 = vld [vmem:[%s1272 + $0x10] sm:$0xff]
                  %1279 = vst [vmem:[%s1273 + $0x20] sm:$0xff] %v1278
                  %v1280 = vld [vmem:[%s1272 + $0x18] sm:$0xff]
                  %1281 = vst [vmem:[%s1273 + $0x28] sm:$0xff] %v1280
                  %v1282 = vld [vmem:[%s1272 + $0x20] sm:$0xff]
                  %1283 = vst [vmem:[%s1273 + $0x40] sm:$0xff] %v1282
                  %v1284 = vld [vmem:[%s1272 + $0x28] sm:$0xff]
                  %1285 = vst [vmem:[%s1273 + $0x48] sm:$0xff] %v1284
                  %v1286 = vld [vmem:[%s1272 + $0x30] sm:$0xff]
                  %1287 = vst [vmem:[%s1273 + $0x60] sm:$0xff] %v1286
                  %v1288 = vld [vmem:[%s1272 + $0x38] sm:$0xff]
                  %1289 = vst [vmem:[%s1273 + $0x68] sm:$0xff] %v1288
                $region60: #{reorg_layer_forward.1} parent=54 // loop_footer
                  %s1271 = sadd.s32 1, %s1267
                $region61: #{reorg_layer_forward.1} parent=54 // loop_footer_branch
                  %1266 = sbr.rel target = $region57
                $region62: #{reorg_layer_forward.1} parent=54 // loop_exit
                  _
              $region55: #{reorg_layer_forward.1} parent=39 // pred_fallthru
                _
              // Predicated region
              $region63: #{reorg_layer_forward.1} parent=39 // pred_check
                _
              $region64: #{reorg_layer_forward.1} parent=39 // pred_check_branch
                %1291 = sbr.rel target = $region66
              $region65: #{reorg_layer_forward.1} parent=39 // pred_region
                _
              $region66: #{reorg_layer_forward.1} parent=39 // pred_fallthru
                _
            $region40: #{reorg_layer_forward.1} parent=35 // pred_fallthru
              _
            // Predicated region
            $region41: #{reorg_layer_forward.1} parent=35 // pred_check
              _
            $region42: #{reorg_layer_forward.1} parent=35 // pred_check_branch
              %1237 = sbr.rel target = $region44
            $region43: #{reorg_layer_forward.1} parent=35 // pred_region
              %s1239 = ssub.s32 256, 1
              loop: start=0, step=1, limit=1
              $region45: #{reorg_layer_forward.1} parent=43 // loop_pre_header
                _
              $region46: #{reorg_layer_forward.1} parent=43 // loop_header
                %s1241 = sphi 0, %s1245
                %p1242 = scmp.ge.s32.totalorder %s1241, 1
                %s1246 = sphi %s1223, %s1223
                %s1247 = sphi %s1231, %s1231
              $region47: #{reorg_layer_forward.1} parent=43 // loop_header_branch
                %1244 = sbr.rel (%p1242) target = $region51
              $region48: #{reorg_layer_forward.1} parent=43 // loop_body
                %v1248 = vld [vmem:[%s1246] sm:%s1239]
                %1249 = vst [vmem:[%s1247] sm:%s1239] %v1248
                %v1250 = vld [vmem:[%s1246 + $0x8] sm:%s1239]
                %1251 = vst [vmem:[%s1247 + $0x8] sm:%s1239] %v1250
                %v1252 = vld [vmem:[%s1246 + $0x10] sm:%s1239]
                %1253 = vst [vmem:[%s1247 + $0x20] sm:%s1239] %v1252
                %v1254 = vld [vmem:[%s1246 + $0x18] sm:%s1239]
                %1255 = vst [vmem:[%s1247 + $0x28] sm:%s1239] %v1254
                %v1256 = vld [vmem:[%s1246 + $0x20] sm:%s1239]
                %1257 = vst [vmem:[%s1247 + $0x40] sm:%s1239] %v1256
                %v1258 = vld [vmem:[%s1246 + $0x28] sm:%s1239]
                %1259 = vst [vmem:[%s1247 + $0x48] sm:%s1239] %v1258
                %v1260 = vld [vmem:[%s1246 + $0x30] sm:%s1239]
                %1261 = vst [vmem:[%s1247 + $0x60] sm:%s1239] %v1260
                %v1262 = vld [vmem:[%s1246 + $0x38] sm:%s1239]
                %1263 = vst [vmem:[%s1247 + $0x68] sm:%s1239] %v1262
              $region49: #{reorg_layer_forward.1} parent=43 // loop_footer
                %s1245 = sadd.s32 1, %s1241
              $region50: #{reorg_layer_forward.1} parent=43 // loop_footer_branch
                %1240 = sbr.rel target = $region46
              $region51: #{reorg_layer_forward.1} parent=43 // loop_exit
                _
            $region44: #{reorg_layer_forward.1} parent=35 // pred_fallthru
              _
          $region36: #{reorg_layer_forward.1} parent=31 // pred_fallthru
            _
          %1292 = vnop
        $region32: #{reorg_layer_forward.1} parent=27 // pred_fallthru
          _
      $region28: #{reorg_layer_forward.1} parent=5 // pred_fallthru
        _
      %p1293 = scmp.le.s32.totalorder 2, %s8
      // Predicated region
      $region67: #{reorg_layer_forward.1} parent=5 // pred_check
        %p1294 = pneg %p1293
      $region68: #{reorg_layer_forward.1} parent=5 // pred_check_branch
        %1296 = sbr.rel (%p1294) target = $region70
      $region69: #{reorg_layer_forward.1} parent=5 // pred_region
        %s1297 = ssub.s32 %s8, 2
        // Predicated region
        $region71: #{reorg_layer_forward.1} parent=69 // pred_check
          %p1298 = pneg %p100
        $region72: #{reorg_layer_forward.1} parent=69 // pred_check_branch
          %1300 = sbr.rel (%p1298) target = $region74
        $region73: #{reorg_layer_forward.1} parent=69 // pred_region
          %s1301 = sand.u32 %s85, 1
          %s1302 = sand.u32 %s85, 1
          %s1303 = smul.addr %s1302, 64
          %s1304 = scalar_lea.vmem [#allocation2], %s1303
        $region74: #{reorg_layer_forward.1} parent=69 // pred_fallthru
          _
      $region70: #{reorg_layer_forward.1} parent=5 // pred_fallthru
        _
    $region6: #{reorg_layer_forward.1} parent=1 // loop_footer
      %s12 = sadd.s32 1, %s8
    $region7: #{reorg_layer_forward.1} parent=1 // loop_footer_branch
      %7 = sbr.rel target = $region3
    $region8: #{reorg_layer_forward.1} parent=1 // loop_exit
      _

</llo_original>
